<compile_context>
chip_gen: v6e
topology: v6e:2x2x1
jax: 0.10.0
libtpu: 0.0.40
codegen_flags: <defaults>
</compile_context>

<pallas_src>
import functools

import jax
import jax.numpy as jnp
from jax.experimental import pallas as pl
from jax.experimental.pallas import tpu as pltpu


def _round_up(x: int, m: int) -> int:
    return (x + m - 1) // m * m


def _edge_mlp_kernel(feat_ref, batch_ref, uproj_ref, w_ref, o_ref, *, activation: bool):
    # feat_ref : (TE, Kfeat)    = concat([dest, src, edge_attr], -1) tile
    # batch_ref: (TE, 1) int32  = graph id per edge
    # uproj_ref: (B, out)       = u @ W_u + b   (resident, bias folded in)
    # w_ref    : (Kfeat, out)   = feature weight slab (resident)
    # o_ref    : (TE, out)
    acc = jnp.dot(feat_ref[...], w_ref[...], preferred_element_type=jnp.float32)

    # Fused u[batch] gather (+ bias): one-hot (TE, B) @ (B, out) on the MXU.
    te = batch_ref.shape[0]
    nb = uproj_ref.shape[0]
    onehot = (batch_ref[...] ==
              jax.lax.broadcasted_iota(jnp.int32, (te, nb), 1)).astype(uproj_ref.dtype)
    acc = acc + jnp.dot(onehot, uproj_ref[...], preferred_element_type=jnp.float32)

    if activation:
        acc = jnp.maximum(acc, 0.0)            # f32 ReLU (safe on v5e's VPU)
    o_ref[...] = acc.astype(o_ref.dtype)       # only cast at the final store


def prepare_edge_model_params(w, b, num_node_feats, num_edge_feats):
    """One-time parameter prep (hoisted out of the hot forward path).

    w: (out_dim, in_dim) PyTorch nn.Linear weight; b: (out_dim,).
    Returns (w_feat, w_u, b) with w_feat: (2*Fn+Fe, out_dim), w_u: (Fg, out_dim).
    """
    k_feat = 2 * num_node_feats + num_edge_feats
    w_t = jnp.asarray(w).T                     # (in_dim, out_dim), transpose once
    w_feat = jnp.asarray(w_t[:k_feat])
    w_u = jnp.asarray(w_t[k_feat:])
    return w_feat, w_u, jnp.asarray(b)


def edge_model_forward(src, dest, edge_attr, u, batch, params, *,
                       activation=True, tile_e=2048,
                       out_dtype=jnp.float32, input_dtype=None):
    """src, dest: (E, Fn); edge_attr: (E, Fe); u: (B, Fg); batch: (E,) int.
    params = prepare_edge_model_params(W, b, Fn, Fe).
    Returns (E, out_dim) in out_dtype."""
    w_feat, w_u, b = params
    E, Fn = dest.shape
    Fe = edge_attr.shape[1]
    B, Fg = u.shape
    k_feat, out_dim = w_feat.shape
    assert k_feat == 2 * Fn + Fe
    assert w_u.shape == (Fg, out_dim)

    # Single feature slab [dest | src | edge_attr]  (tiny fused XLA concat).
    feats = jnp.concatenate([dest, src, edge_attr], axis=-1)          # (E, Kfeat)

    # Tiny (B, out_dim) globals projection with the bias folded in.
    u_proj = (jnp.dot(u.astype(jnp.float32), w_u.astype(jnp.float32))
              + b.astype(jnp.float32).reshape(1, out_dim))

    if input_dtype is not None:
        # Only a win if the producer already emits this dtype / cast is fused.
        feats = feats.astype(input_dtype)
        w_feat = w_feat.astype(input_dtype)
        u_proj = u_proj.astype(input_dtype)

    batch2d = batch.reshape(E, 1).astype(jnp.int32)

    # Edge-tile size: dtype-correct sublane multiple (f32->8, bf16->16, int8/fp8->32).
    isz = jnp.dtype(feats.dtype).itemsize
    sublane = {4: 8, 2: 16, 1: 32}.get(isz, 8)
    TE = min(_round_up(tile_e, sublane), _round_up(E, sublane))
    grid = (pl.cdiv(E, TE),)

    # VMEM budget (lane-padded): double-buffered tile inputs + output, resident weights.
    out_isz = jnp.dtype(out_dtype).itemsize
    lane = lambda n: _round_up(n, 128)
    tile_in_bytes = TE * lane(k_feat) * isz + TE * 128 * 4            # feats + batch ids
    tile_out_bytes = TE * lane(out_dim) * out_isz
    resident_bytes = (_round_up(k_feat, 8) * lane(out_dim) * isz
                      + _round_up(B, 8) * lane(out_dim) * jnp.dtype(u_proj.dtype).itemsize)
    vmem_bytes = 2 * (tile_in_bytes + tile_out_bytes) + resident_bytes
    vmem_limit = int(min(48 * 1024 * 1024, max(2 * vmem_bytes, 16 * 1024 * 1024)))

    cost = pl.CostEstimate(
        flops=2 * E * k_feat * out_dim + 2 * E * B * out_dim,
        transcendentals=0,
        bytes_accessed=int(E * k_feat * isz + E * 4
                           + E * out_dim * out_isz + resident_bytes),
    )

    kernel = functools.partial(_edge_mlp_kernel, activation=activation)

    return pl.pallas_call(
        kernel,
        out_shape=jax.ShapeDtypeStruct((E, out_dim), out_dtype),
        grid_spec=pltpu.PrefetchScalarGridSpec(
            num_scalar_prefetch=0,
            grid=grid,
            in_specs=[
                pl.BlockSpec((TE, k_feat), lambda i: (i, 0)),        # features (tiled)
                pl.BlockSpec((TE, 1), lambda i: (i, 0)),             # batch ids (tiled)
                pl.BlockSpec((B, out_dim), lambda i: (0, 0)),        # u @ W_u + b (resident)
                pl.BlockSpec((k_feat, out_dim), lambda i: (0, 0)),   # W_feat (resident)
            ],
            out_specs=pl.BlockSpec((TE, out_dim), lambda i: (i, 0)),
        ),
        compiler_params=pltpu.CompilerParams(
            dimension_semantics=("parallel",),    # shards E-tiles across TCs on v7x
            vmem_limit_bytes=vmem_limit,
        ),
        cost_estimate=cost,
    )(feats, batch2d, u_proj, w_feat)


if __name__ == "__main__":
    key = jax.random.PRNGKey(0)
    k_src, k_dst, k_edge, k_u, k_w, k_b = jax.random.split(key, 6)

    # Small shapes consistent with the module; E chosen so the small-tile run has
    # a partial last tile (exercises block clipping), out_dim lane-dense (128).
    E, B = 200, 3            # edges, graphs
    Fn, Fe, Fg = 8, 8, 8     # node / edge / global feature dims
    in_dim = 2 * Fn + Fe + Fg
    out_dim = 128

    src = jax.random.normal(k_src, (E, Fn), dtype=jnp.float32)
    dest = jax.random.normal(k_dst, (E, Fn), dtype=jnp.float32)
    edge_attr = jax.random.normal(k_edge, (E, Fe), dtype=jnp.float32)
    u = jax.random.normal(k_u, (B, Fg), dtype=jnp.float32)
    batch = jnp.array([i % B for i in range(E)], dtype=jnp.int32)

    # PyTorch Linear layout: W (out_dim, in_dim), b (out_dim,).
    w = jax.random.normal(k_w, (out_dim, in_dim), dtype=jnp.float32) * 0.1
    b = jax.random.normal(k_b, (out_dim,), dtype=jnp.float32) * 0.1
    # One-time parameter prep (transpose + split), hoisted out of the forward path.
    params = prepare_edge_model_params(w, b, Fn, Fe)

    # Pure-JAX reference (mirrors the PyTorch forward).
    x_ref = jnp.concatenate([dest, src, edge_attr, u[batch]], -1)
    ref = jnp.maximum(x_ref @ w.T + b, 0.0)

    # 1) f32-output path with a small tile (grid of 4, partial last tile).
    out = edge_model_forward(src, dest, edge_attr, u, batch, params,
                             activation=True, tile_e=64)
    out = jax.block_until_ready(out)
    assert out.shape == (E, out_dim)
    assert jnp.allclose(out, ref, atol=1e-5, rtol=1e-5)

    # 2) Recommended v6e/v7x config: big tile (default 2048 -> one tile here) and
    #    bf16 output; f32 accumulate/ReLU inside, cast only at the final store.
    out_bf16 = edge_model_forward(src, dest, edge_attr, u, batch, params,
                                  activation=True, out_dtype=jnp.bfloat16)
    out_bf16 = jax.block_until_ready(out_bf16)
    assert out_bf16.dtype == jnp.bfloat16
    assert jnp.allclose(out_bf16.astype(jnp.float32), ref, atol=2e-2, rtol=2e-2)

    # 3) No-activation variant (covers the activation=False module config).
    ref_noact = x_ref @ w.T + b
    out_noact = edge_model_forward(src, dest, edge_attr, u, batch, params,
                                   activation=False, tile_e=64)
    out_noact = jax.block_until_ready(out_noact)
    assert jnp.allclose(out_noact, ref_noact, atol=1e-5, rtol=1e-5)

    print("KERNEL_OK")
</pallas_src>

<mosaic_0001>
module attributes {stable_mosaic.version = 11 : i64} {
  func.func @_edge_mlp_kernel(%arg0: i32, %arg1: memref<64x24xf32, #tpu.memory_space<vmem>>, %arg2: memref<64x1xi32, #tpu.memory_space<vmem>>, %arg3: memref<3x128xf32, #tpu.memory_space<vmem>>, %arg4: memref<24x128xf32, #tpu.memory_space<vmem>>, %arg5: memref<64x128xf32, #tpu.memory_space<vmem>>) attributes {dimension_semantics = [#tpu.dimension_semantics<parallel>], iteration_bounds = array<i64: 4>, scalar_prefetch = 0 : i64, scratch_operands = 0 : i64, tpu.core_type = #tpu.core_type<tc>, window_params = [{transform_indices = @transform_0, window_bounds = array<i64: 64, 24>}, {transform_indices = @transform_1, window_bounds = array<i64: 64, 1>}, {pipeline_mode = #tpu.pipeline_mode<synchronous>, transform_indices = @transform_2, window_bounds = array<i64: 3, 128>}, {pipeline_mode = #tpu.pipeline_mode<synchronous>, transform_indices = @transform_3, window_bounds = array<i64: 24, 128>}, {transform_indices = @transform_4, window_bounds = array<i64: 64, 128>}]} {
    %c0 = arith.constant 0 : index
    %c0_0 = arith.constant 0 : index
    %0 = vector.load %arg1[%c0, %c0_0] : memref<64x24xf32, #tpu.memory_space<vmem>>, vector<64x24xf32>
    %c0_1 = arith.constant 0 : index
    %c0_2 = arith.constant 0 : index
    %1 = vector.load %arg4[%c0_1, %c0_2] : memref<24x128xf32, #tpu.memory_space<vmem>>, vector<24x128xf32>
    %cst = arith.constant dense<0.000000e+00> : vector<64x128xf32>
    %2 = tpu.matmul %0, %1, %cst {dimension_numbers = #tpu.dot_dimension_numbers<[1], [0], [0], [1], [0, 0, 1, 1], [], []>} : vector<64x24xf32>, vector<24x128xf32>, vector<64x128xf32> -> vector<64x128xf32>
    %c0_3 = arith.constant 0 : index
    %c0_4 = arith.constant 0 : index
    %3 = vector.load %arg2[%c0_3, %c0_4] : memref<64x1xi32, #tpu.memory_space<vmem>>, vector<64x1xi32>
    %4 = tpu.iota {dimensions = array<i32: 1>} : vector<64x3xi32>
    %5 = vector.broadcast %3 : vector<64x1xi32> to vector<64x3xi32>
    %6 = arith.cmpi eq, %5, %4 : vector<64x3xi32>
    %7 = arith.extui %6 : vector<64x3xi1> to vector<64x3xi32>
    %8 = arith.sitofp %7 : vector<64x3xi32> to vector<64x3xf32>
    %c0_5 = arith.constant 0 : index
    %c0_6 = arith.constant 0 : index
    %9 = vector.load %arg3[%c0_5, %c0_6] : memref<3x128xf32, #tpu.memory_space<vmem>>, vector<3x128xf32>
    %cst_7 = arith.constant dense<0.000000e+00> : vector<64x128xf32>
    %10 = tpu.matmul %8, %9, %cst_7 {dimension_numbers = #tpu.dot_dimension_numbers<[1], [0], [0], [1], [0, 0, 1, 1], [], []>} : vector<64x3xf32>, vector<3x128xf32>, vector<64x128xf32> -> vector<64x128xf32>
    %11 = arith.addf %2, %10 : vector<64x128xf32>
    %cst_8 = arith.constant 0.000000e+00 : f32
    %12 = vector.broadcast %cst_8 : f32 to vector<64x128xf32>
    %13 = arith.maximumf %11, %12 : vector<64x128xf32>
    %c0_9 = arith.constant 0 : index
    %c0_10 = arith.constant 0 : index
    %14 = vector.load %arg5[%c0_9, %c0_10] : memref<64x128xf32, #tpu.memory_space<vmem>>, vector<64x128xf32>
    tpu.vector_store %arg5[%c0_9, %c0_10], %13 {strides = array<i32>} : memref<64x128xf32, #tpu.memory_space<vmem>>, vector<64x128xf32>,
    return
  }
  func.func @transform_0(%arg0: i32) -> (i32, i32) {
    %c0_i32 = arith.constant 0 : i32
    %c0_i32_0 = arith.constant 0 : i32
    return %arg0, %c0_i32 : i32, i32
  }
  func.func @transform_1(%arg0: i32) -> (i32, i32) {
    %c0_i32 = arith.constant 0 : i32
    %c0_i32_0 = arith.constant 0 : i32
    return %arg0, %c0_i32 : i32, i32
  }
  func.func @transform_2(%arg0: i32) -> (i32, i32) {
    %c0_i32 = arith.constant 0 : i32
    %c0_i32_0 = arith.constant 0 : i32
    %c0_i32_1 = arith.constant 0 : i32
    return %c0_i32, %c0_i32_0 : i32, i32
  }
  func.func @transform_3(%arg0: i32) -> (i32, i32) {
    %c0_i32 = arith.constant 0 : i32
    %c0_i32_0 = arith.constant 0 : i32
    %c0_i32_1 = arith.constant 0 : i32
    return %c0_i32, %c0_i32_0 : i32, i32
  }
  func.func @transform_4(%arg0: i32) -> (i32, i32) {
    %c0_i32 = arith.constant 0 : i32
    %c0_i32_0 = arith.constant 0 : i32
    return %arg0, %c0_i32 : i32, i32
  }
}

</mosaic_0001>

<llo_original>
// kernel: tpu_custom_call.1
$region0: #{tpu_custom_call.1}
  #allocation0 [shape = 'u32[]', space=smem, size = 0x4, offset = 0x4, fixed_abs, tag = 'smem constant byte address 0x4 - core index']
  #allocation1 [shape = 'u32[144,128]{1,0:T(1,128)}', space=vmem, size = 0x12000, scoped, tag = 'internal scratch']
  %s0 = inlined_call_operand.vmem [shape: f32[200,24], index: 0, kind: input, shape index: {}]
  %s1 = inlined_call_operand.vmem [shape: s32[200,1], index: 1, kind: input, shape index: {}]
  %s2 = inlined_call_operand.vmem [shape: f32[3,128], index: 2, kind: input, shape index: {}]
  %s3 = inlined_call_operand.vmem [shape: f32[24,128], index: 3, kind: input, shape index: {}]
  %s4 = inlined_call_operand.hbm [shape: f32[200,128], index: 4, kind: output, shape index: {}]
  %s5 = sld [smem:[#allocation0]]
  $region49: #{tpu_custom_call.1} parent=0
    _
  %s7 = ssub.s32 1, %s5
  %s8 = scalar_select 0, %s7, %s5
  $region1: #{tpu_custom_call.1} parent=0
    #allocation2 [shape = 'u8[65536]{0}', space=vmem, size = 0x10000, scoped, tag = 'output window, operand 0']
    #allocation3 [shape = 's32[2]{0}', space=sflag, size = 0x8, scoped, tag = 'scoped memory for tpu_custom_call.1']
    %9 = vsyncpa [#allocation3], 0
    %s10 = scalar_lea.sflag [#allocation3], 1
    %11 = vsyncpa %s10, 0
    loop: start=0, step=1, limit=6
    $region2: #{tpu_custom_call.1} parent=1 // loop_pre_header
      _
    $region3: #{tpu_custom_call.1} parent=1 // loop_header
      %s13 = sphi 0, %s17
      %p14 = scmp.ge.s32.totalorder %s13, 6
      %s23 = sphi 0, %s25
      %s26 = sphi 0, %s23
      %s27 = sphi 0, %s26
      %s43 = sphi 0, %s27
      %s49 = sphi 0, %s51
      %s52 = sphi 0, %s49
      %s53 = sphi 0, %s52
      %s69 = sphi 0, %s53
      %s73 = sphi 0, %s73
      %s75 = sphi 0, %s73
      %s76 = sphi 0, %s75
      %s90 = sphi 0, %s76
      %s94 = sphi 0, %s94
      %s96 = sphi 0, %s94
      %s97 = sphi 0, %s96
      %s111 = sphi 0, %s97
      %s117 = sphi 0, %s119
      %s120 = sphi 0, %s117
      %s121 = sphi 0, %s120
      %s137 = sphi 0, %s121
    $region4: #{tpu_custom_call.1} parent=1 // loop_header_branch
      %16 = sbr.rel (%p14) target = $region8
    $region5: #{tpu_custom_call.1} parent=1 // loop_body
      %s18 = ssub.s32 %s13, 1
      %s19 = ssub.s32 %s13, 2
      %s20 = sadd.s32 %s13, 1
      %s21 = ssub.s32 %s13, %s20
      %p22 = scmp.eq.s32.totalorder %s21, 0
      %s24 = sadd.s32 %s23, 1
      %s25 = scalar_select %p22, %s23, %s24
      %p28 = pneg %p22
      %p29 = scmp.eq.s32.totalorder %s13, 3
      %p30 = por %p28, %p29
      %p31 = scmp.ne.s32.totalorder %s23, %s26
      %p32 = scmp.eq.s32.totalorder %s13, 0
      %p33 = por %p31, %p32
      %p34 = scmp.ne.s32.totalorder %s23, %s26
      %p35 = scmp.eq.s32.totalorder %s18, 3
      %p36 = por %p34, %p35
      %p37 = scmp.ne.s32.totalorder %s26, %s27
      %p38 = scmp.eq.s32.totalorder %s18, 0
      %p39 = por %p37, %p38
      %p40 = scmp.ne.s32.totalorder %s26, %s27
      %p41 = scmp.eq.s32.totalorder %s19, 3
      %p42 = por %p40, %p41
      %p44 = scmp.ne.s32.totalorder %s27, %s43
      %p45 = scmp.eq.s32.totalorder %s19, 0
      %p46 = por %p44, %p45
      %s47 = ssub.s32 %s13, %s20
      %p48 = scmp.eq.s32.totalorder %s47, 0
      %s50 = sadd.s32 %s49, 1
      %s51 = scalar_select %p48, %s49, %s50
      %p54 = pneg %p48
      %p55 = scmp.eq.s32.totalorder %s13, 3
      %p56 = por %p54, %p55
      %p57 = scmp.ne.s32.totalorder %s49, %s52
      %p58 = scmp.eq.s32.totalorder %s13, 0
      %p59 = por %p57, %p58
      %p60 = scmp.ne.s32.totalorder %s49, %s52
      %p61 = scmp.eq.s32.totalorder %s18, 3
      %p62 = por %p60, %p61
      %p63 = scmp.ne.s32.totalorder %s52, %s53
      %p64 = scmp.eq.s32.totalorder %s18, 0
      %p65 = por %p63, %p64
      %p66 = scmp.ne.s32.totalorder %s52, %s53
      %p67 = scmp.eq.s32.totalorder %s19, 3
      %p68 = por %p66, %p67
      %p70 = scmp.ne.s32.totalorder %s53, %s69
      %p71 = scmp.eq.s32.totalorder %s19, 0
      %p72 = por %p70, %p71
      %s74 = sadd.s32 %s73, 1
      %p77 = scmp.eq.s32.totalorder %s13, 3
      %p78 = scmp.ne.s32.totalorder %s73, %s75
      %p79 = scmp.eq.s32.totalorder %s13, 0
      %p80 = por %p78, %p79
      %p81 = scmp.ne.s32.totalorder %s73, %s75
      %p82 = scmp.eq.s32.totalorder %s18, 3
      %p83 = por %p81, %p82
      %p84 = scmp.ne.s32.totalorder %s75, %s76
      %p85 = scmp.eq.s32.totalorder %s18, 0
      %p86 = por %p84, %p85
      %p87 = scmp.ne.s32.totalorder %s75, %s76
      %p88 = scmp.eq.s32.totalorder %s19, 3
      %p89 = por %p87, %p88
      %p91 = scmp.ne.s32.totalorder %s76, %s90
      %p92 = scmp.eq.s32.totalorder %s19, 0
      %p93 = por %p91, %p92
      %s95 = sadd.s32 %s94, 1
      %p98 = scmp.eq.s32.totalorder %s13, 3
      %p99 = scmp.ne.s32.totalorder %s94, %s96
      %p100 = scmp.eq.s32.totalorder %s13, 0
      %p101 = por %p99, %p100
      %p102 = scmp.ne.s32.totalorder %s94, %s96
      %p103 = scmp.eq.s32.totalorder %s18, 3
      %p104 = por %p102, %p103
      %p105 = scmp.ne.s32.totalorder %s96, %s97
      %p106 = scmp.eq.s32.totalorder %s18, 0
      %p107 = por %p105, %p106
      %p108 = scmp.ne.s32.totalorder %s96, %s97
      %p109 = scmp.eq.s32.totalorder %s19, 3
      %p110 = por %p108, %p109
      %p112 = scmp.ne.s32.totalorder %s97, %s111
      %p113 = scmp.eq.s32.totalorder %s19, 0
      %p114 = por %p112, %p113
      %s115 = ssub.s32 %s13, %s20
      %p116 = scmp.eq.s32.totalorder %s115, 0
      %s118 = sadd.s32 %s117, 1
      %s119 = scalar_select %p116, %s117, %s118
      %p122 = pneg %p116
      %p123 = scmp.eq.s32.totalorder %s13, 3
      %p124 = por %p122, %p123
      %p125 = scmp.ne.s32.totalorder %s117, %s120
      %p126 = scmp.eq.s32.totalorder %s13, 0
      %p127 = por %p125, %p126
      %p128 = scmp.ne.s32.totalorder %s117, %s120
      %p129 = scmp.eq.s32.totalorder %s18, 3
      %p130 = por %p128, %p129
      %p131 = scmp.ne.s32.totalorder %s120, %s121
      %p132 = scmp.eq.s32.totalorder %s18, 0
      %p133 = por %p131, %p132
      %p134 = scmp.ne.s32.totalorder %s120, %s121
      %p135 = scmp.eq.s32.totalorder %s19, 3
      %p136 = por %p134, %p135
      %p138 = scmp.ne.s32.totalorder %s121, %s137
      %p139 = scmp.eq.s32.totalorder %s19, 0
      %p140 = por %p138, %p139
      %p141 = scmp.le.s32.totalorder 1, %s13
      %p142 = scmp.lt.s32.totalorder %s13, 5
      %p143 = pnand %p141, %p142
      %p144 = pneg %p143
      // Predicated region
      $region9: #{tpu_custom_call.1} parent=5 // pred_check
        _
      $region10: #{tpu_custom_call.1} parent=5 // pred_check_branch
        %146 = sbr.rel (%p143) target = $region12
      $region11: #{tpu_custom_call.1} parent=5 // pred_region
        %s147 = ssub.s32 %s13, 1
        // Predicated region
        $region13: #{tpu_custom_call.1} parent=11 // pred_check
          %p148 = pneg %p86
        $region14: #{tpu_custom_call.1} parent=11 // pred_check_branch
          %150 = sbr.rel (%p148) target = $region16
        $region15: #{tpu_custom_call.1} parent=11 // pred_region
          _
        $region16: #{tpu_custom_call.1} parent=11 // pred_fallthru
          _
        // Predicated region
        $region17: #{tpu_custom_call.1} parent=11 // pred_check
          %p151 = pneg %p107
        $region18: #{tpu_custom_call.1} parent=11 // pred_check_branch
          %153 = sbr.rel (%p151) target = $region20
        $region19: #{tpu_custom_call.1} parent=11 // pred_region
          _
        $region20: #{tpu_custom_call.1} parent=11 // pred_fallthru
          _
      $region12: #{tpu_custom_call.1} parent=5 // pred_fallthru
        _
      %p154 = scmp.lt.s32.totalorder %s13, 4
      // Predicated region
      $region21: #{tpu_custom_call.1} parent=5 // pred_check
        %p155 = pneg %p154
      $region22: #{tpu_custom_call.1} parent=5 // pred_check_branch
        %157 = sbr.rel (%p155) target = $region24
      $region23: #{tpu_custom_call.1} parent=5 // pred_region
        // Predicated region
        $region25: #{tpu_custom_call.1} parent=23 // pred_check
          %p158 = pneg %p33
        $region26: #{tpu_custom_call.1} parent=23 // pred_check_branch
          %160 = sbr.rel (%p158) target = $region28
        $region27: #{tpu_custom_call.1} parent=23 // pred_region
          %s161 = smul.u32 8, %s13
          %s162 = ssub.s32 25, %s161
          %p163 = scmp.lt.s32.totalorder %s162, 8
          %s164 = scalar_select %p163, %s162, 8
          %s165 = smul.u32 128, %s164
          %p166 = scmp.lt.s32.totalorder %s161, 24
          %s167 = scalar_select %p166, %s161, 24
          %s168 = smul.addr %s167, 8
          %s169 = scalar_lea.vmem %s0, %s168
          %s170 = smul.u32 8, %s13
          %s171 = ssub.s32 25, %s170
          %p172 = scmp.lt.s32.totalorder %s171, 8
          %s173 = scalar_select %p172, %s171, 8
          %s174 = smul.u32 128, %s173
        $region28: #{tpu_custom_call.1} parent=23 // pred_fallthru
          _
        // Predicated region
        $region29: #{tpu_custom_call.1} parent=23 // pred_check
          %p175 = pneg %p59
        $region30: #{tpu_custom_call.1} parent=23 // pred_check_branch
          %177 = sbr.rel (%p175) target = $region32
        $region31: #{tpu_custom_call.1} parent=23 // pred_region
          %s178 = smul.u32 8, %s13
          %s179 = ssub.s32 25, %s178
          %p180 = scmp.lt.s32.totalorder %s179, 8
          %s181 = scalar_select %p180, %s179, 8
          %s182 = smul.u32 128, %s181
          %p183 = scmp.lt.s32.totalorder %s178, 24
          %s184 = scalar_select %p183, %s178, 24
          %s185 = smul.addr %s184, 8
          %s186 = scalar_lea.vmem %s1, %s185
          %s187 = smul.u32 8, %s13
          %s188 = ssub.s32 25, %s187
          %p189 = scmp.lt.s32.totalorder %s188, 8
          %s190 = scalar_select %p189, %s188, 8
          %s191 = smul.u32 128, %s190
        $region32: #{tpu_custom_call.1} parent=23 // pred_fallthru
          _
      $region24: #{tpu_custom_call.1} parent=5 // pred_fallthru
        _
      %p192 = scmp.le.s32.totalorder 1, %s13
      %p193 = scmp.lt.s32.totalorder %s13, 5
      %p194 = pnand %p192, %p193
      %p195 = pneg %p194
      // Predicated region
      $region33: #{tpu_custom_call.1} parent=5 // pred_check
        _
      $region34: #{tpu_custom_call.1} parent=5 // pred_check_branch
        %197 = sbr.rel (%p194) target = $region36
      $region35: #{tpu_custom_call.1} parent=5 // pred_region
        %s198 = ssub.s32 %s13, 1
        %s199 = smul.u32 8, %s18
        %s200 = ssub.s32 25, %s199
        %p201 = scmp.lt.s32.totalorder %s200, 8
        %s202 = scalar_select %p201, %s200, 8
        %s203 = smul.u32 128, %s202
        %p204 = scmp.lt.s32.totalorder %s199, 24
        %s205 = scalar_select %p204, %s199, 24
        %s206 = smul.addr %s205, 8
        %s207 = scalar_lea.vmem %s0, %s206
        %p208 = pneg %p39
        %p209 = pneg %p36
        %s210 = smul.u32 8, %s18
        %s211 = ssub.s32 25, %s210
        %p212 = scmp.lt.s32.totalorder %s211, 8
        %s213 = scalar_select %p212, %s211, 8
        %s214 = smul.u32 128, %s213
        %p215 = scmp.lt.s32.totalorder %s210, 24
        %s216 = scalar_select %p215, %s210, 24
        %s217 = smul.addr %s216, 8
        %s218 = scalar_lea.vmem %s1, %s217
        %p219 = pneg %p65
        %p220 = pneg %p62
        %p221 = pneg %p86
        %p222 = pneg %p83
        %p223 = pneg %p107
        %p224 = pneg %p104
        %p225 = pneg %p133
        %p226 = pneg %p130
        %s227 = sand.u32 %s120, 1
        %s228 = scalar_lea.sflag [#allocation3], %s227
        %s229 = sand.u32 %s120, 1
        %s230 = smul.addr %s229, 64
        %s231 = scalar_lea.vmem [#allocation2], %s230
        %s232 = smul.u32 8, %s18
        %s233 = ssub.s32 25, %s232
        %p234 = scmp.lt.s32.totalorder %s233, 8
        %s235 = scalar_select %p234, %s233, 8
        %s236 = smul.u32 128, %s235
        %p237 = scmp.lt.s32.totalorder %s232, 24
        %s238 = scalar_select %p237, %s232, 24
        %s239 = smul.addr %s238, 8
        %s240 = scalar_lea.vmem %s0, %s239
        %s241 = smul.u32 8, %s18
        %s242 = ssub.s32 25, %s241
        %p243 = scmp.lt.s32.totalorder %s242, 8
        %s244 = scalar_select %p243, %s242, 8
        %s245 = smul.u32 128, %s244
        %s246 = smul.u32 8, %s18
        %s247 = ssub.s32 25, %s246
        %p248 = scmp.lt.s32.totalorder %s247, 8
        %s249 = scalar_select %p248, %s247, 8
        %s250 = smul.u32 128, %s249
        %p251 = scmp.lt.s32.totalorder %s246, 24
        %s252 = scalar_select %p251, %s246, 24
        %s253 = smul.addr %s252, 8
        %s254 = scalar_lea.vmem %s1, %s253
        %s255 = smul.u32 8, %s18
        %s256 = ssub.s32 25, %s255
        %p257 = scmp.lt.s32.totalorder %s256, 8
        %s258 = scalar_select %p257, %s256, 8
        %s259 = smul.u32 128, %s258
        %s260 = smul.u32 8, %s18
        %s261 = ssub.s32 25, %s260
        %p262 = scmp.lt.s32.totalorder %s261, 8
        %s263 = scalar_select %p262, %s261, 8
        %s264 = smul.u32 128, %s263
        %v265 = vld [vmem:[%s240] sm:$0xff]
        %v266 = vld [vmem:[%s240 + $0x8] sm:$0xff]
        %v267 = vld [vmem:[%s240 + $0x10] sm:$0xff]
        %v268 = vld [vmem:[%s240 + $0x18] sm:$0xff]
        %v269 = vld [vmem:[%s240 + $0x20] sm:$0xff]
        %v270 = vld [vmem:[%s240 + $0x28] sm:$0xff]
        %v271 = vld [vmem:[%s240 + $0x30] sm:$0xff]
        %v272 = vld [vmem:[%s240 + $0x38] sm:$0xff]
        %v273 = vld [vmem:[%s3] sm:$0xff]
        %v274 = vld [vmem:[%s3 + $0x8] sm:$0xff]
        %v275 = vld [vmem:[%s3 + $0x10] sm:$0xff]
        %v276 = vld [vmem:[%s254] sm:$0xff]
        %v277 = vld [vmem:[%s254 + $0x8] sm:$0xff]
        %v278 = vld [vmem:[%s254 + $0x10] sm:$0xff]
        %v279 = vld [vmem:[%s254 + $0x18] sm:$0xff]
        %v280 = vld [vmem:[%s254 + $0x20] sm:$0xff]
        %v281 = vld [vmem:[%s254 + $0x28] sm:$0xff]
        %v282 = vld [vmem:[%s254 + $0x30] sm:$0xff]
        %v283 = vld [vmem:[%s254 + $0x38] sm:$0xff]
        %v284 = vlaneseq
        %v285 = vand.u32 %v284, 127
        %286 = vset.pattern.permute.xlu0 0
        %287 = vperm.xlu0 %286, %v276
        %v288 = vpop.permute.xlu0 %287
        %289 = vset.pattern.permute.xlu0 0
        %290 = vperm.xlu0 %289, %v277
        %v291 = vpop.permute.xlu0 %290
        %292 = vset.pattern.permute.xlu0 0
        %293 = vperm.xlu0 %292, %v278
        %v294 = vpop.permute.xlu0 %293
        %295 = vset.pattern.permute.xlu0 0
        %296 = vperm.xlu0 %295, %v279
        %v297 = vpop.permute.xlu0 %296
        %298 = vset.pattern.permute.xlu0 0
        %299 = vperm.xlu0 %298, %v280
        %v300 = vpop.permute.xlu0 %299
        %301 = vset.pattern.permute.xlu0 0
        %302 = vperm.xlu0 %301, %v281
        %v303 = vpop.permute.xlu0 %302
        %304 = vset.pattern.permute.xlu0 0
        %305 = vperm.xlu0 %304, %v282
        %v306 = vpop.permute.xlu0 %305
        %307 = vset.pattern.permute.xlu0 0
        %308 = vperm.xlu0 %307, %v283
        %v309 = vpop.permute.xlu0 %308
        %vm310 = vcmp.eq.s32.totalorder %v288, %v285
        %vm311 = vcmp.eq.s32.totalorder %v291, %v285
        %vm312 = vcmp.eq.s32.totalorder %v294, %v285
        %vm313 = vcmp.eq.s32.totalorder %v297, %v285
        %vm314 = vcmp.eq.s32.totalorder %v300, %v285
        %vm315 = vcmp.eq.s32.totalorder %v303, %v285
        %vm316 = vcmp.eq.s32.totalorder %v306, %v285
        %vm317 = vcmp.eq.s32.totalorder %v309, %v285
        %v318 = vsel %vm310, 1, 0
        %v319 = vsel %vm311, 1, 0
        %v320 = vsel %vm312, 1, 0
        %v321 = vsel %vm313, 1, 0
        %v322 = vsel %vm314, 1, 0
        %v323 = vsel %vm315, 1, 0
        %v324 = vsel %vm316, 1, 0
        %v325 = vsel %vm317, 1, 0
        %v326 = vcvt.s32.f32 %v318
        %v327 = vcvt.s32.f32 %v319
        %v328 = vcvt.s32.f32 %v320
        %v329 = vcvt.s32.f32 %v321
        %v330 = vcvt.s32.f32 %v322
        %v331 = vcvt.s32.f32 %v323
        %v332 = vcvt.s32.f32 %v324
        %v333 = vcvt.s32.f32 %v325
        %v334 = vld [vmem:[%s2] sm:$0x7]
        %vm335 = vcmask 23552
        %v337 = vsel %vm335, %v326, 0
        %v340 = vsel %vm335, %v327, 0
        %v343 = vsel %vm335, %v328, 0
        %v346 = vsel %vm335, %v329, 0
        %v349 = vsel %vm335, %v330, 0
        %v352 = vsel %vm335, %v331, 0
        %v355 = vsel %vm335, %v332, 0
        %v358 = vsel %vm335, %v333, 0
        %vm360 = vcmask 1042432
        %v362 = vsel %vm360, %v334, 0
        %364 = vmatprep.subr.mxu0 0.0
        %365 = vmatpush1.msra.mxu0 0.0
        %366 = vmatprep.subr.mxu0 0.0
        %367 = vmatpush1.msra.mxu0 0.0
        %368 = vmatprep.subr.mxu0 0.0
        %369 = vmatpush1.msra.mxu0 0.0
        %370 = vmatprep.subr.mxu0 0.0
        %371 = vmatpush1.msra.mxu0 0.0
        %372 = vmatprep.subr.mxu0 0.0
        %373 = vmatpush1.msra.mxu0 0.0
        %374 = vmatprep.subr.mxu0 0.0
        %375 = vmatpush1.msra.mxu0 0.0
        %376 = vmatprep.subr.mxu0 0.0
        %377 = vmatpush1.msra.mxu0 0.0
        %378 = vmatprep.subr.mxu0 0.0
        %379 = vmatpush1.msra.mxu0 0.0
        %380 = vmatprep.subr.mxu0 0.0
        %381 = vmatpush1.msra.mxu0 0.0
        %382 = vmatprep.subr.mxu0 0.0
        %383 = vmatpush1.msra.mxu0 0.0
        %384 = vmatprep.subr.mxu0 0.0
        %385 = vmatpush1.msra.mxu0 0.0
        %386 = vmatprep.subr.mxu0 0.0
        %387 = vmatpush1.msra.mxu0 0.0
        %388 = vmatprep.subr.mxu0 0.0
        %389 = vmatpush1.msra.mxu0 0.0
        %390 = vmatprep.subr.mxu0 0.0
        %391 = vmatpush1.msra.mxu0 0.0
        %392 = vmatprep.subr.mxu0 0.0
        %393 = vmatpush1.msra.mxu0 0.0
        %394 = vmatprep.subr.mxu0 0.0
        %395 = vmatpush1.msra.mxu0 %v362
        %396 = vmatprep.subr.mxu0 0.0
        %397 = vmatpush2.msra.mxu0 0.0
        %398 = vmatprep.subr.mxu0 0.0
        %399 = vmatpush2.msra.mxu0 0.0
        %400 = vmatprep.subr.mxu0 0.0
        %401 = vmatpush2.msra.mxu0 0.0
        %402 = vmatprep.subr.mxu0 0.0
        %403 = vmatpush2.msra.mxu0 0.0
        %404 = vmatprep.subr.mxu0 0.0
        %405 = vmatpush2.msra.mxu0 0.0
        %406 = vmatprep.subr.mxu0 0.0
        %407 = vmatpush2.msra.mxu0 0.0
        %408 = vmatprep.subr.mxu0 0.0
        %409 = vmatpush2.msra.mxu0 0.0
        %410 = vmatprep.subr.mxu0 0.0
        %411 = vmatpush2.msra.mxu0 0.0
        %412 = vmatprep.subr.mxu0 0.0
        %413 = vmatpush2.msra.mxu0 0.0
        %414 = vmatprep.subr.mxu0 0.0
        %415 = vmatpush2.msra.mxu0 0.0
        %416 = vmatprep.subr.mxu0 0.0
        %417 = vmatpush2.msra.mxu0 0.0
        %418 = vmatprep.subr.mxu0 0.0
        %419 = vmatpush2.msra.mxu0 0.0
        %420 = vmatprep.subr.mxu0 0.0
        %421 = vmatpush2.msra.mxu0 0.0
        %422 = vmatprep.subr.mxu0 0.0
        %423 = vmatpush2.msra.mxu0 0.0
        %424 = vmatprep.subr.mxu0 0.0
        %425 = vmatpush2.msra.mxu0 0.0
        %426 = vmatprep.subr.mxu0 0.0
        %427 = vmatpush2.msra.mxu0 0.0
        %428 = vmatprep.mubr.f32.mxu0 0.0
        %429 = vmatmul.mubr.f32.gmra.mxu0 %v337
        %v430 = vpop.f32.mrf.mxu0
        %v431 = vadd.f32 0.0, %v430
        %v432 = vpop.f32.mrf.mxu0
        %433 = vmatprep.mubr.f32.mxu0 0.0
        %434 = vmatmul.mubr.f32.gmra.mxu0 %v340
        %v435 = vpop.f32.mrf.mxu0
        %v436 = vadd.f32 0.0, %v435
        %v437 = vpop.f32.mrf.mxu0
        %438 = vmatprep.mubr.f32.mxu0 0.0
        %439 = vmatmul.mubr.f32.gmra.mxu0 %v343
        %v440 = vpop.f32.mrf.mxu0
        %v441 = vadd.f32 0.0, %v440
        %v442 = vpop.f32.mrf.mxu0
        %443 = vmatprep.mubr.f32.mxu0 0.0
        %444 = vmatmul.mubr.f32.gmra.mxu0 %v346
        %v445 = vpop.f32.mrf.mxu0
        %v446 = vadd.f32 0.0, %v445
        %v447 = vpop.f32.mrf.mxu0
        %448 = vmatprep.mubr.f32.mxu0 0.0
        %449 = vmatmul.mubr.f32.gmra.mxu0 %v349
        %v450 = vpop.f32.mrf.mxu0
        %v451 = vadd.f32 0.0, %v450
        %v452 = vpop.f32.mrf.mxu0
        %453 = vmatprep.mubr.f32.mxu0 0.0
        %454 = vmatmul.mubr.f32.gmra.mxu0 %v352
        %v455 = vpop.f32.mrf.mxu0
        %v456 = vadd.f32 0.0, %v455
        %v457 = vpop.f32.mrf.mxu0
        %458 = vmatprep.mubr.f32.mxu0 0.0
        %459 = vmatmul.mubr.f32.gmra.mxu0 %v355
        %v460 = vpop.f32.mrf.mxu0
        %v461 = vadd.f32 0.0, %v460
        %v462 = vpop.f32.mrf.mxu0
        %463 = vmatprep.mubr.f32.mxu0 0.0
        %464 = vmatmul.mubr.f32.gmra.mxu0 %v358
        %v465 = vpop.f32.mrf.mxu0
        %v466 = vadd.f32 0.0, %v465
        %v467 = vpop.f32.mrf.mxu0
        %468 = vdwg.mxu0
        %vm469 = vcmask 195584
        %v471 = vsel %vm469, %v265, 0
        %v474 = vsel %vm469, %v266, 0
        %v477 = vsel %vm469, %v267, 0
        %v480 = vsel %vm469, %v268, 0
        %v483 = vsel %vm469, %v269, 0
        %v486 = vsel %vm469, %v270, 0
        %v489 = vsel %vm469, %v271, 0
        %v492 = vsel %vm469, %v272, 0
        %494 = vmatprep.subr.mxu0 0.0
        %495 = vmatpush1.msra.mxu0 0.0
        %496 = vmatprep.subr.mxu0 0.0
        %497 = vmatpush1.msra.mxu0 0.0
        %498 = vmatprep.subr.mxu0 0.0
        %499 = vmatpush1.msra.mxu0 0.0
        %500 = vmatprep.subr.mxu0 0.0
        %501 = vmatpush1.msra.mxu0 0.0
        %502 = vmatprep.subr.mxu0 0.0
        %503 = vmatpush1.msra.mxu0 0.0
        %504 = vmatprep.subr.mxu0 0.0
        %505 = vmatpush1.msra.mxu0 0.0
        %506 = vmatprep.subr.mxu0 0.0
        %507 = vmatpush1.msra.mxu0 0.0
        %508 = vmatprep.subr.mxu0 0.0
        %509 = vmatpush1.msra.mxu0 0.0
        %510 = vmatprep.subr.mxu0 0.0
        %511 = vmatpush1.msra.mxu0 0.0
        %512 = vmatprep.subr.mxu0 0.0
        %513 = vmatpush1.msra.mxu0 0.0
        %514 = vmatprep.subr.mxu0 0.0
        %515 = vmatpush1.msra.mxu0 0.0
        %516 = vmatprep.subr.mxu0 0.0
        %517 = vmatpush1.msra.mxu0 0.0
        %518 = vmatprep.subr.mxu0 0.0
        %519 = vmatpush1.msra.mxu0 0.0
        %520 = vmatprep.subr.mxu0 0.0
        %521 = vmatpush1.msra.mxu0 %v275
        %522 = vmatprep.subr.mxu0 0.0
        %523 = vmatpush1.msra.mxu0 %v274
        %524 = vmatprep.subr.mxu0 0.0
        %525 = vmatpush1.msra.mxu0 %v273
        %526 = vmatprep.subr.mxu0 0.0
        %527 = vmatpush2.msra.mxu0 0.0
        %528 = vmatprep.subr.mxu0 0.0
        %529 = vmatpush2.msra.mxu0 0.0
        %530 = vmatprep.subr.mxu0 0.0
        %531 = vmatpush2.msra.mxu0 0.0
        %532 = vmatprep.subr.mxu0 0.0
        %533 = vmatpush2.msra.mxu0 0.0
        %534 = vmatprep.subr.mxu0 0.0
        %535 = vmatpush2.msra.mxu0 0.0
        %536 = vmatprep.subr.mxu0 0.0
        %537 = vmatpush2.msra.mxu0 0.0
        %538 = vmatprep.subr.mxu0 0.0
        %539 = vmatpush2.msra.mxu0 0.0
        %540 = vmatprep.subr.mxu0 0.0
        %541 = vmatpush2.msra.mxu0 0.0
        %542 = vmatprep.subr.mxu0 0.0
        %543 = vmatpush2.msra.mxu0 0.0
        %544 = vmatprep.subr.mxu0 0.0
        %545 = vmatpush2.msra.mxu0 0.0
        %546 = vmatprep.subr.mxu0 0.0
        %547 = vmatpush2.msra.mxu0 0.0
        %548 = vmatprep.subr.mxu0 0.0
        %549 = vmatpush2.msra.mxu0 0.0
        %550 = vmatprep.subr.mxu0 0.0
        %551 = vmatpush2.msra.mxu0 0.0
        %552 = vmatprep.subr.mxu0 0.0
        %553 = vmatpush2.msra.mxu0 0.0
        %554 = vmatprep.subr.mxu0 0.0
        %555 = vmatpush2.msra.mxu0 0.0
        %556 = vmatprep.subr.mxu0 0.0
        %557 = vmatpush2.msra.mxu0 0.0
        %558 = vmatprep.mubr.f32.mxu0 0.0
        %559 = vmatmul.mubr.f32.gmra.mxu0 %v471
        %v560 = vpop.f32.mrf.mxu0
        %v561 = vadd.f32 %v431, %v560
        %v562 = vpop.f32.mrf.mxu0
        %563 = vmatprep.mubr.f32.mxu0 0.0
        %564 = vmatmul.mubr.f32.gmra.mxu0 %v474
        %v565 = vpop.f32.mrf.mxu0
        %v566 = vadd.f32 %v436, %v565
        %v567 = vpop.f32.mrf.mxu0
        %568 = vmatprep.mubr.f32.mxu0 0.0
        %569 = vmatmul.mubr.f32.gmra.mxu0 %v477
        %v570 = vpop.f32.mrf.mxu0
        %v571 = vadd.f32 %v441, %v570
        %v572 = vpop.f32.mrf.mxu0
        %573 = vmatprep.mubr.f32.mxu0 0.0
        %574 = vmatmul.mubr.f32.gmra.mxu0 %v480
        %v575 = vpop.f32.mrf.mxu0
        %v576 = vadd.f32 %v446, %v575
        %v577 = vpop.f32.mrf.mxu0
        %578 = vmatprep.mubr.f32.mxu0 0.0
        %579 = vmatmul.mubr.f32.gmra.mxu0 %v483
        %v580 = vpop.f32.mrf.mxu0
        %v581 = vadd.f32 %v451, %v580
        %v582 = vpop.f32.mrf.mxu0
        %583 = vmatprep.mubr.f32.mxu0 0.0
        %584 = vmatmul.mubr.f32.gmra.mxu0 %v486
        %v585 = vpop.f32.mrf.mxu0
        %v586 = vadd.f32 %v456, %v585
        %v587 = vpop.f32.mrf.mxu0
        %588 = vmatprep.mubr.f32.mxu0 0.0
        %589 = vmatmul.mubr.f32.gmra.mxu0 %v489
        %v590 = vpop.f32.mrf.mxu0
        %v591 = vadd.f32 %v461, %v590
        %v592 = vpop.f32.mrf.mxu0
        %593 = vmatprep.mubr.f32.mxu0 0.0
        %594 = vmatmul.mubr.f32.gmra.mxu0 %v492
        %v595 = vpop.f32.mrf.mxu0
        %v596 = vadd.f32 %v466, %v595
        %v597 = vpop.f32.mrf.mxu0
        %598 = vdwg.mxu0
        %v599 = vmax.f32 %v561, 0.0
        %v600 = vmax.f32 %v566, 0.0
        %v601 = vmax.f32 %v571, 0.0
        %v602 = vmax.f32 %v576, 0.0
        %v603 = vmax.f32 %v581, 0.0
        %v604 = vmax.f32 %v586, 0.0
        %v605 = vmax.f32 %v591, 0.0
        %v606 = vmax.f32 %v596, 0.0
        %607 = vst [vmem:[%s231] sm:$0xff] %v599
        %608 = vst [vmem:[%s231 + $0x8] sm:$0xff] %v600
        %609 = vst [vmem:[%s231 + $0x10] sm:$0xff] %v601
        %610 = vst [vmem:[%s231 + $0x18] sm:$0xff] %v602
        %611 = vst [vmem:[%s231 + $0x20] sm:$0xff] %v603
        %612 = vst [vmem:[%s231 + $0x28] sm:$0xff] %v604
        %613 = vst [vmem:[%s231 + $0x30] sm:$0xff] %v605
        %614 = vst [vmem:[%s231 + $0x38] sm:$0xff] %v606
        %s615 = sand.u32 %s120, 1
        %s616 = scalar_lea.sflag [#allocation3], %s615
        %s617 = sand.u32 %s120, 1
        %s618 = smul.addr %s617, 64
        %s619 = scalar_lea.vmem [#allocation2], %s618
        // Predicated region
        $region37: #{tpu_custom_call.1} parent=35 // pred_check
          %p620 = pneg %p130
        $region38: #{tpu_custom_call.1} parent=35 // pred_check_branch
          %622 = sbr.rel (%p620) target = $region40
        $region39: #{tpu_custom_call.1} parent=35 // pred_region
          %s623 = smul.u32 8, %s18
          %s624 = ssub.s32 25, %s623
          %p625 = scmp.lt.s32.totalorder %s624, 8
          %s626 = scalar_select %p625, %s624, 8
          %s627 = smul.u32 128, %s626
          %s629 = ssub.s32 1024, %s627
          %630 = vsyncadd %s616, %s629
          %p631 = scmp.ne.s32.totalorder 0, %s627
          %s632 = smul.addr %s623, 128
          %s633 = scalar_lea.hbm %s4, %s632
          %s634 = smul.u32 8, %s626
          %s635 = sshll.u32 %s619, 4
          %s636 = int_to_ptr.vmem [resolvable:$true] %s635
          %s637 = sshll.u32 %s634, 4
          %641 = dma.vmem_to_hbm [thread:$0]  (%p631), %s636, %s637, %s633, %s616, 128, 128, 8
        $region40: #{tpu_custom_call.1} parent=35 // pred_fallthru
          _
      $region36: #{tpu_custom_call.1} parent=5 // pred_fallthru
        _
      %p642 = scmp.le.s32.totalorder 2, %s13
      // Predicated region
      $region41: #{tpu_custom_call.1} parent=5 // pred_check
        %p643 = pneg %p642
      $region42: #{tpu_custom_call.1} parent=5 // pred_check_branch
        %645 = sbr.rel (%p643) target = $region44
      $region43: #{tpu_custom_call.1} parent=5 // pred_region
        %s646 = ssub.s32 %s13, 2
        // Predicated region
        $region45: #{tpu_custom_call.1} parent=43 // pred_check
          %p647 = pneg %p136
        $region46: #{tpu_custom_call.1} parent=43 // pred_check_branch
          %649 = sbr.rel (%p647) target = $region48
        $region47: #{tpu_custom_call.1} parent=43 // pred_region
          %s650 = sand.u32 %s121, 1
          %s651 = scalar_lea.sflag [#allocation3], %s650
          %s652 = sand.u32 %s121, 1
          %s653 = smul.addr %s652, 64
          %s654 = scalar_lea.vmem [#allocation2], %s653
          %655 = dma.done %s651, 1024
        $region48: #{tpu_custom_call.1} parent=43 // pred_fallthru
          _
      $region44: #{tpu_custom_call.1} parent=5 // pred_fallthru
        _
    $region6: #{tpu_custom_call.1} parent=1 // loop_footer
      %s17 = sadd.s32 1, %s13
    $region7: #{tpu_custom_call.1} parent=1 // loop_footer_branch
      %12 = sbr.rel target = $region3
    $region8: #{tpu_custom_call.1} parent=1 // loop_exit
      _
    %656 = vsyncpa [#allocation3], 1
    %s657 = scalar_lea.sflag [#allocation3], 1
    %658 = vsyncpa %s657, 1

</llo_original>
